<compile_context>
chip_gen: v7x
topology: tpu7x:2x2x1
jax: 0.10.0
libtpu: 0.0.40
codegen_flags: <defaults>
</compile_context>

<pallas_src>
import functools
import math

import jax
import jax.numpy as jnp
from jax.experimental import pallas as pl
from jax.experimental.pallas import tpu as pltpu


def _location_kernel(std, logpi_const, s_ref, w_ref, b_ref, noise_ref,
                     lt_ref, logpi_ref):
    # fc_lt + tanh; MXU matmul with f32 accumulation. The narrow N=out_size
    # dimension is padded to vreg width internally by Mosaic — no wrapper pad.
    mu = jnp.tanh(
        jnp.dot(s_ref[...], w_ref[...], preferred_element_type=jnp.float32)
        + b_ref[...]
    )

    # Reparameterized sample (rsample): l_t = mu + std*eps; detach is a
    # forward no-op. Clamp applies only to the returned location.
    noise = noise_ref[...]
    lt_ref[...] = jnp.clip(mu + std * noise, -1.0, 1.0)

    # log_pi = sum_j Normal(mu, std).log_prob(mu + std*eps)_j        (UNCLAMPED
    # sample, matching the PyTorch code)
    #        = -0.5 * sum_j eps_j^2 + out_size * (-log(std) - 0.5*log(2*pi))
    # The noise block is exactly (tb, out_size), so the full-axis sum is exact.
    logpi_ref[...] = (
        -0.5 * jnp.sum(noise * noise, axis=1, keepdims=True) + logpi_const
    )


def _round_up(x, m):
    return ((x + m - 1) // m) * m


def location_network_forward(s_t, w_lt, b_lt, noise, std, *, tile_b=4096):
    """LocationNetwork forward.

    s_t:   (B, input_size) f32 hidden state
    w_lt:  (input_size, output_size) f32 fc_lt weight (stored pre-transposed)
    b_lt:  (output_size,) f32 fc_lt bias
    noise: (B, output_size) f32 standard-normal draws (rsample eps)
    std:   Python float
    Returns (log_pi: (B,), l_t: (B, output_size)).
    """
    B, input_size = s_t.shape
    out_size = w_lt.shape[1]

    s_t = s_t.astype(jnp.float32)
    w_lt = w_lt.astype(jnp.float32)
    b2 = b_lt.reshape(1, out_size).astype(jnp.float32)
    noise = noise.astype(jnp.float32)

    # Batch tiling: big tiles to amortize per-grid-step overhead; for large B
    # cap the tile at ~ceil(B/2) rounded to 8 sublanes so the "parallel" grid
    # has >= 2 steps (v7x 2nd TensorCore). Single full block for small B.
    half = _round_up(pl.cdiv(B, 2), 8)
    tb = min(tile_b, half)
    if tb >= B:
        tb = B  # one full block (legal even when B is not a multiple of 8)
    grid = (pl.cdiv(B, tb),)

    logpi_const = out_size * (-math.log(std) - 0.5 * math.log(2.0 * math.pi))
    # TODO(synk): std / logpi_const are folded as trace-time Python floats; if
    # std ever becomes a traced/learned array, route it via an SMEM scalar.
    kernel = functools.partial(_location_kernel, float(std), float(logpi_const))

    l_t, log_pi = pl.pallas_call(
        kernel,
        out_shape=(
            jax.ShapeDtypeStruct((B, out_size), jnp.float32),  # l_t
            jax.ShapeDtypeStruct((B, 1), jnp.float32),         # log_pi
        ),
        grid=grid,
        in_specs=[
            pl.BlockSpec((tb, input_size), lambda i: (i, 0)),        # s_t tile
            pl.BlockSpec((input_size, out_size), lambda i: (0, 0)),  # W (resident)
            pl.BlockSpec((1, out_size), lambda i: (0, 0)),           # b (resident)
            pl.BlockSpec((tb, out_size), lambda i: (i, 0)),          # noise tile
        ],
        out_specs=(
            pl.BlockSpec((tb, out_size), lambda i: (i, 0)),          # l_t
            pl.BlockSpec((tb, 1), lambda i: (i, 0)),                 # log_pi
        ),
        compiler_params=pltpu.CompilerParams(
            dimension_semantics=("parallel",),
        ),
    )(s_t, w_lt, b2, noise)

    return log_pi[:, 0], l_t


if __name__ == "__main__":
    # Small shapes consistent with the module: hidden state -> 2-D location.
    B = 8
    input_size = 32
    output_size = 2
    std = 0.17

    key = jax.random.PRNGKey(0)
    k_s, k_w, k_b, k_n = jax.random.split(key, 4)

    s_t = jax.random.normal(k_s, (B, input_size), dtype=jnp.float32)
    # fc_lt parameters (W stored pre-transposed: (in, out))
    w_lt = jax.random.normal(k_w, (input_size, output_size), dtype=jnp.float32) * 0.1
    b_lt = jax.random.normal(k_b, (output_size,), dtype=jnp.float32) * 0.1
    noise = jax.random.normal(k_n, (B, output_size), dtype=jnp.float32)

    log_pi, l_t = location_network_forward(s_t, w_lt, b_lt, noise, std)
    jax.block_until_ready((log_pi, l_t))

    # Reference check in plain JAX (original, un-simplified log_prob formula).
    mu_ref = jnp.tanh(s_t @ w_lt + b_lt)
    lt_raw = mu_ref + std * noise
    logpi_ref = jnp.sum(
        -((lt_raw - mu_ref) ** 2) / (2.0 * std * std)
        - jnp.log(std)
        - 0.5 * jnp.log(2.0 * jnp.pi),
        axis=1,
    )
    lt_ref = jnp.clip(lt_raw, -1.0, 1.0)

    assert log_pi.shape == (B,) and l_t.shape == (B, output_size)
    assert jnp.allclose(log_pi, logpi_ref, atol=1e-5), "log_pi mismatch"
    assert jnp.allclose(l_t, lt_ref, atol=1e-5), "l_t mismatch"

    print("KERNEL_OK")
</pallas_src>

<mosaic_0001>
module attributes {stable_mosaic.version = 11 : i64} {
  func.func @_location_kernel(%arg0: i32, %arg1: memref<8x32xf32, #tpu.memory_space<vmem>>, %arg2: memref<32x2xf32, #tpu.memory_space<vmem>>, %arg3: memref<1x2xf32, #tpu.memory_space<vmem>>, %arg4: memref<8x2xf32, #tpu.memory_space<vmem>>, %arg5: memref<8x2xf32, #tpu.memory_space<vmem>>, %arg6: memref<8x1xf32, #tpu.memory_space<vmem>>) attributes {dimension_semantics = [#tpu.dimension_semantics<parallel>], iteration_bounds = array<i64: 1>, scalar_prefetch = 0 : i64, scratch_operands = 0 : i64, tpu.core_type = #tpu.core_type<tc>, window_params = [{transform_indices = @transform_0, window_bounds = array<i64: 8, 32>}, {pipeline_mode = #tpu.pipeline_mode<synchronous>, transform_indices = @transform_1, window_bounds = array<i64: 32, 2>}, {pipeline_mode = #tpu.pipeline_mode<synchronous>, transform_indices = @transform_2, window_bounds = array<i64: 1, 2>}, {transform_indices = @transform_3, window_bounds = array<i64: 8, 2>}, {transform_indices = @transform_4, window_bounds = array<i64: 8, 2>}, {transform_indices = @transform_5, window_bounds = array<i64: 8, 1>}]} {
    %c0 = arith.constant 0 : index
    %c0_0 = arith.constant 0 : index
    %0 = vector.load %arg1[%c0, %c0_0] : memref<8x32xf32, #tpu.memory_space<vmem>>, vector<8x32xf32>
    %c0_1 = arith.constant 0 : index
    %c0_2 = arith.constant 0 : index
    %1 = vector.load %arg2[%c0_1, %c0_2] : memref<32x2xf32, #tpu.memory_space<vmem>>, vector<32x2xf32>
    %cst = arith.constant dense<0.000000e+00> : vector<8x2xf32>
    %2 = tpu.matmul %0, %1, %cst {dimension_numbers = #tpu.dot_dimension_numbers<[1], [0], [0], [1], [0, 0, 1, 1], [], []>} : vector<8x32xf32>, vector<32x2xf32>, vector<8x2xf32> -> vector<8x2xf32>
    %c0_3 = arith.constant 0 : index
    %c0_4 = arith.constant 0 : index
    %3 = vector.load %arg3[%c0_3, %c0_4] : memref<1x2xf32, #tpu.memory_space<vmem>>, vector<1x2xf32>
    %4 = vector.broadcast %3 : vector<1x2xf32> to vector<8x2xf32>
    %5 = arith.addf %2, %4 : vector<8x2xf32>
    %6 = math.tanh %5 : vector<8x2xf32>
    %c0_5 = arith.constant 0 : index
    %c0_6 = arith.constant 0 : index
    %7 = vector.load %arg4[%c0_5, %c0_6] : memref<8x2xf32, #tpu.memory_space<vmem>>, vector<8x2xf32>
    %cst_7 = arith.constant 1.700000e-01 : f32
    %8 = vector.broadcast %cst_7 : f32 to vector<8x2xf32>
    %9 = arith.mulf %8, %7 : vector<8x2xf32>
    %10 = arith.addf %6, %9 : vector<8x2xf32>
    %cst_8 = arith.constant -1.000000e+00 : f32
    %cst_9 = arith.constant 1.000000e+00 : f32
    %11 = vector.broadcast %cst_8 : f32 to vector<8x2xf32>
    %12 = arith.maximumf %11, %10 : vector<8x2xf32>
    %13 = vector.broadcast %cst_9 : f32 to vector<8x2xf32>
    %14 = arith.minimumf %13, %12 : vector<8x2xf32>
    %c0_10 = arith.constant 0 : index
    %c0_11 = arith.constant 0 : index
    %15 = vector.load %arg5[%c0_10, %c0_11] : memref<8x2xf32, #tpu.memory_space<vmem>>, vector<8x2xf32>
    tpu.vector_store %arg5[%c0_10, %c0_11], %14 {strides = array<i32>} : memref<8x2xf32, #tpu.memory_space<vmem>>, vector<8x2xf32>,
    %16 = arith.mulf %7, %7 : vector<8x2xf32>
    %cst_12 = arith.constant dense<0.000000e+00> : vector<8xf32>
    %17 = vector.multi_reduction <add>, %16, %cst_12 [1] : vector<8x2xf32> to vector<8xf32>
    %18 = vector.shape_cast %17 : vector<8xf32> to vector<8x1xf32>
    %cst_13 = arith.constant -5.000000e-01 : f32
    %19 = vector.broadcast %cst_13 : f32 to vector<8x1xf32>
    %20 = arith.mulf %19, %18 : vector<8x1xf32>
    %cst_14 = arith.constant 1.70603657 : f32
    %21 = vector.broadcast %cst_14 : f32 to vector<8x1xf32>
    %22 = arith.addf %20, %21 : vector<8x1xf32>
    %c0_15 = arith.constant 0 : index
    %c0_16 = arith.constant 0 : index
    %23 = vector.load %arg6[%c0_15, %c0_16] : memref<8x1xf32, #tpu.memory_space<vmem>>, vector<8x1xf32>
    tpu.vector_store %arg6[%c0_15, %c0_16], %22 {strides = array<i32>} : memref<8x1xf32, #tpu.memory_space<vmem>>, vector<8x1xf32>,
    return
  }
  func.func @transform_0(%arg0: i32) -> (i32, i32) {
    %c0_i32 = arith.constant 0 : i32
    %c0_i32_0 = arith.constant 0 : i32
    return %arg0, %c0_i32 : i32, i32
  }
  func.func @transform_1(%arg0: i32) -> (i32, i32) {
    %c0_i32 = arith.constant 0 : i32
    %c0_i32_0 = arith.constant 0 : i32
    %c0_i32_1 = arith.constant 0 : i32
    return %c0_i32, %c0_i32_0 : i32, i32
  }
  func.func @transform_2(%arg0: i32) -> (i32, i32) {
    %c0_i32 = arith.constant 0 : i32
    %c0_i32_0 = arith.constant 0 : i32
    %c0_i32_1 = arith.constant 0 : i32
    return %c0_i32, %c0_i32_0 : i32, i32
  }
  func.func @transform_3(%arg0: i32) -> (i32, i32) {
    %c0_i32 = arith.constant 0 : i32
    %c0_i32_0 = arith.constant 0 : i32
    return %arg0, %c0_i32 : i32, i32
  }
  func.func @transform_4(%arg0: i32) -> (i32, i32) {
    %c0_i32 = arith.constant 0 : i32
    %c0_i32_0 = arith.constant 0 : i32
    return %arg0, %c0_i32 : i32, i32
  }
  func.func @transform_5(%arg0: i32) -> (i32, i32) {
    %c0_i32 = arith.constant 0 : i32
    %c0_i32_0 = arith.constant 0 : i32
    return %arg0, %c0_i32 : i32, i32
  }
}

</mosaic_0001>

<llo_original>
// kernel: tpu_custom_call.1
$region0: #{tpu_custom_call.1}
  #allocation0 [shape = 'u32[]', space=smem, size = 0x4, offset = 0x4, fixed_abs, tag = 'smem constant byte address 0x4 - core index']
  #allocation1 [shape = 'u32[144,128]{1,0:T(1,128)}', space=vmem, size = 0x12000, scoped, tag = 'internal scratch']
  %s0 = inlined_call_operand.vmem [shape: f32[8,32], index: 0, kind: input, shape index: {}]
  %s1 = inlined_call_operand.vmem [shape: f32[32,2], index: 1, kind: input, shape index: {}]
  %s2 = inlined_call_operand.vmem [shape: f32[1,2], index: 2, kind: input, shape index: {}]
  %s3 = inlined_call_operand.vmem [shape: f32[8,2], index: 3, kind: input, shape index: {}]
  %s4 = inlined_call_operand.vmem [shape: f32[8,2], index: 4, kind: output, shape index: {0}]
  %s5 = inlined_call_operand.vmem [shape: f32[8,1], index: 5, kind: output, shape index: {1}]
  %6 = xla_tuple %s4, %s5
  %s7 = sld [smem:[#allocation0]]
  $region34: #{tpu_custom_call.1} parent=0
    _
  %s9 = ssub.s32 1, %s7
  %s10 = scalar_select 0, %s9, %s7
  // Predicated region
  $region2: #{tpu_custom_call.1} parent=0 // pred_check
    _
  $region3: #{tpu_custom_call.1} parent=0 // pred_check_branch
    %12 = sbr.rel (0) target = $region5
  $region4: #{tpu_custom_call.1} parent=0 // pred_region
    _
  $region5: #{tpu_custom_call.1} parent=0 // pred_fallthru
    _
  // Predicated region
  $region6: #{tpu_custom_call.1} parent=0 // pred_check
    _
  $region7: #{tpu_custom_call.1} parent=0 // pred_check_branch
    %14 = sbr.rel (0) target = $region9
  $region8: #{tpu_custom_call.1} parent=0 // pred_region
    _
  $region9: #{tpu_custom_call.1} parent=0 // pred_fallthru
    _
  // Predicated region
  $region10: #{tpu_custom_call.1} parent=0 // pred_check
    _
  $region11: #{tpu_custom_call.1} parent=0 // pred_check_branch
    %16 = sbr.rel (0) target = $region13
  $region12: #{tpu_custom_call.1} parent=0 // pred_region
    _
  $region13: #{tpu_custom_call.1} parent=0 // pred_fallthru
    _
  // Predicated region
  $region14: #{tpu_custom_call.1} parent=0 // pred_check
    _
  $region15: #{tpu_custom_call.1} parent=0 // pred_check_branch
    %18 = sbr.rel (0) target = $region17
  $region16: #{tpu_custom_call.1} parent=0 // pred_region
    _
  $region17: #{tpu_custom_call.1} parent=0 // pred_fallthru
    _
  %v19 = vld [vmem:[%s0] sm:$0xff]
  %v20 = vld [vmem:[%s1] sm:$0xff]
  %v21 = vld [vmem:[%s1 + $0x8] sm:$0xff]
  %v22 = vld [vmem:[%s1 + $0x10] sm:$0xff]
  %v23 = vld [vmem:[%s1 + $0x18] sm:$0xff]
  %v24 = vld [vmem:[%s2] sm:$0x1]
  %v26 = vlaneseq
  %v27 = vshrl.u32 %v26, 7
  %v28 = vsub.s32 0, %v27
  %v29 = vrot.slane %v24, %v28
  %vm31 = vcmask 261120
  %v33 = vsel %vm31, %v19, 0
  %35 = vmatprep.subr.mxu0 0.0
  %36 = vmatpush1.msra.mxu0 %v20
  %37 = vmatprep.subr.mxu0 0.0
  %38 = vmatpush1.msra.mxu0 %v21
  %39 = vmatprep.subr.mxu0 0.0
  %40 = vmatpush1.msra.mxu0 %v22
  %41 = vmatprep.subr.mxu0 0.0
  %42 = vmatpush1.msra.mxu0 %v23
  %43 = vmatprep.subr.mxu0 0.0
  %44 = vmatpush1.msra.mxu0 0.0
  %45 = vmatprep.subr.mxu0 0.0
  %46 = vmatpush1.msra.mxu0 0.0
  %47 = vmatprep.subr.mxu0 0.0
  %48 = vmatpush1.msra.mxu0 0.0
  %49 = vmatprep.subr.mxu0 0.0
  %50 = vmatpush1.msra.mxu0 0.0
  %51 = vmatprep.subr.mxu0 0.0
  %52 = vmatpush1.msra.mxu0 0.0
  %53 = vmatprep.subr.mxu0 0.0
  %54 = vmatpush1.msra.mxu0 0.0
  %55 = vmatprep.subr.mxu0 0.0
  %56 = vmatpush1.msra.mxu0 0.0
  %57 = vmatprep.subr.mxu0 0.0
  %58 = vmatpush1.msra.mxu0 0.0
  %59 = vmatprep.subr.mxu0 0.0
  %60 = vmatpush1.msra.mxu0 0.0
  %61 = vmatprep.subr.mxu0 0.0
  %62 = vmatpush1.msra.mxu0 0.0
  %63 = vmatprep.subr.mxu0 0.0
  %64 = vmatpush1.msra.mxu0 0.0
  %65 = vmatprep.subr.mxu0 0.0
  %66 = vmatpush1.msra.mxu0 0.0
  %67 = vmatprep.subr.mxu0 0.0
  %68 = vmatpush1.msra.mxu0 0.0
  %69 = vmatprep.subr.mxu0 0.0
  %70 = vmatpush1.msra.mxu0 0.0
  %71 = vmatprep.subr.mxu0 0.0
  %72 = vmatpush1.msra.mxu0 0.0
  %73 = vmatprep.subr.mxu0 0.0
  %74 = vmatpush1.msra.mxu0 0.0
  %75 = vmatprep.subr.mxu0 0.0
  %76 = vmatpush1.msra.mxu0 0.0
  %77 = vmatprep.subr.mxu0 0.0
  %78 = vmatpush1.msra.mxu0 0.0
  %79 = vmatprep.subr.mxu0 0.0
  %80 = vmatpush1.msra.mxu0 0.0
  %81 = vmatprep.subr.mxu0 0.0
  %82 = vmatpush1.msra.mxu0 0.0
  %83 = vmatprep.subr.mxu0 0.0
  %84 = vmatpush1.msra.mxu0 0.0
  %85 = vmatprep.subr.mxu0 0.0
  %86 = vmatpush1.msra.mxu0 0.0
  %87 = vmatprep.subr.mxu0 0.0
  %88 = vmatpush1.msra.mxu0 0.0
  %89 = vmatprep.subr.mxu0 0.0
  %90 = vmatpush1.msra.mxu0 0.0
  %91 = vmatprep.subr.mxu0 0.0
  %92 = vmatpush1.msra.mxu0 0.0
  %93 = vmatprep.subr.mxu0 0.0
  %94 = vmatpush1.msra.mxu0 0.0
  %95 = vmatprep.subr.mxu0 0.0
  %96 = vmatpush1.msra.mxu0 0.0
  %97 = vmatprep.subr.mxu0 0.0
  %98 = vmatpush1.msra.mxu0 0.0
  %99 = vmatprep.mubr.f32.mxu0 0.0
  %100 = vmatmul.mubr.f32.gmra.mrb[0].mxu0 %v33
  %v101 = vpop.f32.mrb[0].mxu0
  %v102 = vadd.f32 %v29, %v101
  %v103 = vpop.f32.mrb[0].mxu0
  %104 = vdwg.mxu0
  %v105 = vtanh.pop %v102
  %v106 = vld [vmem:[%s3] sm:$0xff]
  %v107 = vmul.f32 %v106, 0.17
  %v108 = vadd.f32 %v105, %v107
  %v109 = vmax.f32 %v108, -1.0
  %v110 = vmin.f32 %v109, 1.0
  %vm111 = vcmask 15360
  %112 = vst.msk [vmem:[%s4] sm:$0xff] %vm111, %v110
  %v113 = vmul.f32 %v106, %v106
  %v114 = vsel %vm111, %v113, 0.0
  %115 = vadd.xlane.f32.xlu0 %v114
  %v116 = vpop.xlane.xlu0 %115
  %v117 = vmul.f32 %v116, -0.5
  %v118 = vadd.f32 %v117, 1.7060366
  %vm119 = vcmask 7168
  %120 = vst.msk [vmem:[%s5] sm:$0xff] %vm119, %v118
  // Predicated region
  $region18: #{tpu_custom_call.1} parent=0 // pred_check
    _
  $region19: #{tpu_custom_call.1} parent=0 // pred_check_branch
    %122 = sbr.rel (0) target = $region21
  $region20: #{tpu_custom_call.1} parent=0 // pred_region
    _
  $region21: #{tpu_custom_call.1} parent=0 // pred_fallthru
    _
  // Predicated region
  $region22: #{tpu_custom_call.1} parent=0 // pred_check
    _
  $region23: #{tpu_custom_call.1} parent=0 // pred_check_branch
    %124 = sbr.rel (0) target = $region25
  $region24: #{tpu_custom_call.1} parent=0 // pred_region
    _
  $region25: #{tpu_custom_call.1} parent=0 // pred_fallthru
    _
  // Predicated region
  $region26: #{tpu_custom_call.1} parent=0 // pred_check
    _
  $region27: #{tpu_custom_call.1} parent=0 // pred_check_branch
    %126 = sbr.rel (0) target = $region29
  $region28: #{tpu_custom_call.1} parent=0 // pred_region
    _
  $region29: #{tpu_custom_call.1} parent=0 // pred_fallthru
    _
  // Predicated region
  $region30: #{tpu_custom_call.1} parent=0 // pred_check
    _
  $region31: #{tpu_custom_call.1} parent=0 // pred_check_branch
    %128 = sbr.rel (0) target = $region33
  $region32: #{tpu_custom_call.1} parent=0 // pred_region
    _
  $region33: #{tpu_custom_call.1} parent=0 // pred_fallthru
    _

</llo_original>
